<compile_context>
chip_gen: v7x
topology: tpu7x:2x2x1
jax: 0.10.0
libtpu: 0.0.40
codegen_flags: <defaults>
</compile_context>

<pallas_src>
import functools

import jax
import jax.numpy as jnp
from jax import lax
from jax.experimental import pallas as pl
from jax.experimental.pallas import tpu as pltpu

BN_EPS = 1e-5
MXU_DTYPE = jnp.bfloat16     # MXU operand dtype; accumulation is always f32.


# ----------------------------- weight prep ----------------------------------

def _fold_bn_into_conv(p):
    """Fold BatchNorm scale into the conv weight; return (w_scaled, bias)."""
    w, gamma, beta, mean, var = p
    scale = gamma / jnp.sqrt(var + BN_EPS)
    return w * scale[:, None, None, None], beta - mean * scale


def _patches_s2_cmajor(x_nchw):
    """3x3 / stride-2 / pad-1 patches, channel-major: [N, 9*Cin, Ho*Wo]."""
    N, Cin, H, W = x_nchw.shape
    Ho = (H - 1) // 2 + 1
    Wo = (W - 1) // 2 + 1
    xp = jnp.pad(x_nchw, ((0, 0), (0, 0), (1, 1), (1, 1)))
    taps = [xp[:, :, ky:ky + 2 * Ho:2, kx:kx + 2 * Wo:2]
            for ky in range(3) for kx in range(3)]
    cols = jnp.stack(taps, axis=1)                    # [N, 9, Cin, Ho, Wo]
    return cols.reshape(N, 9 * Cin, Ho * Wo), Ho, Wo


def _prep_weights(params, Cout, Ch, Chp):
    """Fold BN, build channel-major matmul weights, fuse splits, pack biases."""
    wd, bd = _fold_bn_into_conv(params["down"])        # [Cout, Cin, 3, 3]
    Cin = wd.shape[1]
    wd = jnp.transpose(wd, (0, 2, 3, 1)).reshape(Cout, 9 * Cin)

    def prep_1x1(p):
        w, b = _fold_bn_into_conv(p)                   # [O, I, 1, 1]
        return w[:, :, 0, 0], b                        # [O, I], [O]

    ws0, bs0 = prep_1x1(params["split0"])
    ws1, bs1 = prep_1x1(params["split1"])
    ws01 = jnp.concatenate([ws0, ws1], axis=0)         # fused splits [2Cout, Cout]
    bs01 = jnp.concatenate([bs0, bs1])

    wb1, bb1 = prep_1x1(params["blk_c1"])              # [Ch, Cout]
    wb1 = jnp.pad(wb1, ((0, Chp - Ch), (0, 0)))        # zero rows -> h[Ch:] == 0
    bb1 = jnp.pad(bb1, ((0, Chp - Ch),))

    wb2, bb2 = _fold_bn_into_conv(params["blk_c2"])    # [Cout, Ch, 3, 3]
    wb2 = jnp.transpose(wb2, (0, 2, 3, 1))             # [Cout, 3, 3, Ch]
    wb2 = jnp.pad(wb2, ((0, 0), (0, 0), (0, 0), (0, Chp - Ch)))
    wb2 = wb2.reshape(Cout, 9 * Chp)                   # tap-major K (matches slab)

    wb3, bb3 = prep_1x1(params["blk_c3"])              # [Cout, Cout]
    wc, bc = prep_1x1(params["concat"])                # [Cout, 2*Cout]

    weights = [w.astype(MXU_DTYPE) for w in (wd, ws01, wb1, wb2, wb3, wc)]

    Cb = -(-max(2 * Cout, Chp, 8) // 8) * 8            # packed bias rows

    def col(b):
        return jnp.pad(b, (0, Cb - b.shape[0])).astype(jnp.float32)

    bias_pack = jnp.stack(
        [col(bd), col(bs01), col(bb1), col(bb2), col(bb3), col(bc)], axis=1)
    return weights, bias_pack                          # bias_pack: [Cb, 6] f32


def _vmem_bytes(shape, dtype):
    """VMEM footprint of one buffer of `shape`, with (sublane, lane) padding."""
    itemsize = jnp.dtype(dtype).itemsize
    sub = {4: 8, 2: 16, 1: 32}.get(itemsize, 8)
    shape = (1,) * max(0, 2 - len(shape)) + tuple(int(d) for d in shape)
    *lead, r, c = shape
    n = 1
    for d in lead:
        n *= d
    return n * (-(-r // sub) * sub) * (-(-c // 128) * 128) * itemsize


# ----------------------------- fused forward --------------------------------

def csp_first_stage(x_nchw, params):
    """CSPFirstStage forward.  x: [N, Cin, H, W] (NCHW) -> [N, Cout, Ho, Wo]."""
    N, Cin, H, W = x_nchw.shape
    Cout = params["down"][0].shape[0]
    Ch = params["blk_c1"][0].shape[0]                  # CSP hidden channels
    Chp = -(-Ch // 8) * 8                              # pad hidden to sublanes

    # JAX-side glue: channel-major stride-2 patches of the (tiny, Cin-channel)
    # network input.  Everything downstream stays in VMEM.
    x_cols, Ho, Wo = _patches_s2_cmajor(x_nchw)
    x_cols = x_cols.astype(MXU_DTYPE)
    M1, K1 = Ho * Wo, 9 * Cin

    weights, bias_pack = _prep_weights(params, Cout, Ch, Chp)

    # Flat, halo'd scratch layout for the CSP 3x3 conv input h:
    #   scratch[:, B + i*Wo + j] = h[:, i, j];   strips [0,B) and [B+M1, L)
    #   hold zeros so the 9 shifted windows read zeros for row over-reads.
    B = Wo + 1
    L = M1 + 2 * Wo + 2

    def kernel(xc_ref, wd_ref, ws01_ref, wb1_ref, wb2_ref, wb3_ref, wc_ref,
               b_ref, o_ref, hflat_ref):
        f32 = jnp.float32

        def mish(v):
            # x * tanh(softplus(x)) with ONE transcendental, no cancellation:
            #   t = e^min(x,20);  tanh(softplus(x)) = t(t+2) / (t(t+2)+2).
            t = jnp.exp(jnp.minimum(v, 20.0))
            r = t * (t + 2.0)
            return v * r * pl.reciprocal(r + 2.0, approx=True)

        def bias(rows, k):                  # [rows, 1] -> broadcasts over lanes
            return b_ref[:rows, k:k + 1]

        # downsample_conv: 3x3 / stride-2 as one [Cout,9Cin] x [9Cin,M1] matmul.
        x = mish(jnp.dot(wd_ref[...], xc_ref[0],
                         preferred_element_type=f32) + bias(Cout, 0))
        # split_conv0 + split_conv1 fused into one matmul; slice on sublanes.
        x01 = mish(jnp.dot(ws01_ref[...], x.astype(MXU_DTYPE),
                           preferred_element_type=f32) + bias(2 * Cout, 1))
        x0, x1 = x01[:Cout], x01[Cout:]
        # CSPBlock conv1 (1x1 -> hidden, zero-padded to Chp rows => h[Ch:]==0).
        h = mish(jnp.dot(wb1_ref[...], x1.astype(MXU_DTYPE),
                         preferred_element_type=f32) + bias(Chp, 2))
        # CSPBlock conv2 (3x3, pad 1): write h into the flat halo'd scratch,
        # take 9 static lane-offset windows, mask the two row-wrap columns and
        # do ONE stacked K=9*Chp matmul.  Only the tiny halo strips are zeroed
        # (per step -> megacore-safe); the interior is fully overwritten.
        hflat_ref[:, :B] = jnp.zeros((Chp, B), f32)
        hflat_ref[:, B + M1:] = jnp.zeros((Chp, Wo + 1), f32)
        hflat_ref[:, B:B + M1] = h
        colj = jax.lax.broadcasted_iota(jnp.int32, (1, M1), 1) % Wo
        not_first = colj != 0            # j == 0     has no left  neighbour
        not_last = colj != Wo - 1        # j == Wo-1  has no right neighbour
        wins = []
        for dy in range(3):
            for dx in range(3):
                s = B + (dy - 1) * Wo + (dx - 1)
                w = hflat_ref[:, s:s + M1]
                if dx == 0:
                    w = jnp.where(not_first, w, 0.0)
                elif dx == 2:
                    w = jnp.where(not_last, w, 0.0)
                wins.append(w)
        slab = jnp.concatenate(wins, axis=0).astype(MXU_DTYPE)   # [9*Chp, M1]
        c2 = jnp.dot(wb2_ref[...], slab,
                     preferred_element_type=f32) + bias(Cout, 3)
        x1 = x1 + mish(c2)               # CSPBlock residual (identity act.)
        # trailing 1x1 of blocks_conv.
        x1 = mish(jnp.dot(wb3_ref[...], x1.astype(MXU_DTYPE),
                          preferred_element_type=f32) + bias(Cout, 4))
        # channel concat (sublanes) + concat_conv as ONE K=2*Cout matmul.
        xcat = jnp.concatenate([x0, x1], axis=0).astype(MXU_DTYPE)
        y = mish(jnp.dot(wc_ref[...], xcat,
                         preferred_element_type=f32) + bias(Cout, 5))
        # Channel-major [Cout, Ho*Wo]: lane-dense store, NCHW after a reshape.
        o_ref[0] = y.astype(o_ref.dtype)

    def whole(a):
        return pl.BlockSpec(a.shape, lambda n, _nd=a.ndim: (0,) * _nd)

    in_specs = ([pl.BlockSpec((1, K1, M1), lambda n: (n, 0, 0))]
                + [whole(w) for w in weights] + [whole(bias_pack)])
    out_specs = pl.BlockSpec((1, Cout, M1), lambda n: (n, 0, 0))

    # VMEM budget: double-buffered I/O blocks + resident weights + scratch +
    # in-kernel live intermediates, all tile-padded; clamp to 3/4 of VMEM.
    need = (2 * (_vmem_bytes((1, K1, M1), MXU_DTYPE)
                 + _vmem_bytes((1, Cout, M1), jnp.float32))
            + 2 * (sum(_vmem_bytes(w.shape, w.dtype) for w in weights)
                   + _vmem_bytes(bias_pack.shape, bias_pack.dtype))
            + _vmem_bytes((Chp, L), jnp.float32)              # hflat scratch
            + 4 * _vmem_bytes((Cout, M1), jnp.float32)        # x, c2, x1, y
            + _vmem_bytes((2 * Cout, M1), jnp.float32)        # x01
            + _vmem_bytes((Chp, M1), jnp.float32)             # h
            + _vmem_bytes((9 * Chp, M1), jnp.float32)         # 9 windows
            + _vmem_bytes((9 * Chp, M1), MXU_DTYPE)           # slab (bf16)
            + _vmem_bytes((2 * Cout, M1), MXU_DTYPE)          # xcat (bf16)
            + (2 << 20))                                      # headroom
    try:
        cap = int(pltpu.get_tpu_info().vmem_capacity_bytes)
    except Exception:
        cap = 64 << 20                                        # v7x per-core VMEM
    vmem_limit = int(min(max(need, 16 << 20), (cap * 3) // 4))

    out = pl.pallas_call(
        kernel,
        out_shape=jax.ShapeDtypeStruct((N, Cout, M1), jnp.float32),
        grid_spec=pltpu.PrefetchScalarGridSpec(
            num_scalar_prefetch=0,
            grid=(N,),
            in_specs=in_specs,
            out_specs=out_specs,
            scratch_shapes=[pltpu.VMEM((Chp, L), jnp.float32)],
        ),
        compiler_params=pltpu.CompilerParams(
            dimension_semantics=("parallel",),
            vmem_limit_bytes=vmem_limit),
    )(x_cols, *weights, bias_pack)

    return out.reshape(N, Cout, Ho, Wo)                # [N,C,Ho*Wo] -> NCHW


# ----------------------------- parameter init -------------------------------

def make_conv_params(key, cin, cout, k):
    k1, k2, k3, k4, k5 = jax.random.split(key, 5)
    w = jax.random.normal(k1, (cout, cin, k, k), jnp.float32) * 0.1
    gamma = jax.random.uniform(k2, (cout,), jnp.float32, 0.5, 1.5)
    beta = jax.random.normal(k3, (cout,), jnp.float32) * 0.1
    mean = jax.random.normal(k4, (cout,), jnp.float32) * 0.1
    var = jax.random.uniform(k5, (cout,), jnp.float32, 0.5, 1.5)
    return (w, gamma, beta, mean, var)


def make_csp_first_stage_params(key, in_channels, out_channels):
    ks = jax.random.split(key, 7)
    hidden = in_channels   # CSPBlock(out, out, hidden_channels=in_channels)
    return {
        "down":   make_conv_params(ks[0], in_channels, out_channels, 3),
        "split0": make_conv_params(ks[1], out_channels, out_channels, 1),
        "split1": make_conv_params(ks[2], out_channels, out_channels, 1),
        "blk_c1": make_conv_params(ks[3], out_channels, hidden, 1),
        "blk_c2": make_conv_params(ks[4], hidden, out_channels, 3),
        "blk_c3": make_conv_params(ks[5], out_channels, out_channels, 1),
        "concat": make_conv_params(ks[6], out_channels * 2, out_channels, 1),
    }


# ----------------------------- pure-JAX reference ---------------------------

def _mish_ref(x):
    sp = jnp.where(x > 20.0, x, jnp.log1p(jnp.exp(jnp.minimum(x, 20.0))))
    return x * jnp.tanh(sp)


def _conv_bn_mish_ref(x_nhwc, p, stride=1, residual=None):
    w, gamma, beta, mean, var = p
    k = w.shape[-1]
    pad = k // 2
    y = lax.conv_general_dilated(
        x_nhwc, jnp.transpose(w, (2, 3, 1, 0)),
        window_strides=(stride, stride), padding=[(pad, pad), (pad, pad)],
        dimension_numbers=("NHWC", "HWIO", "NHWC"))
    scale = gamma / jnp.sqrt(var + BN_EPS)
    y = y * scale + (beta - mean * scale)
    y = _mish_ref(y)
    if residual is not None:
        y = y + residual
    return y


def csp_first_stage_ref(x_nchw, params):
    x = jnp.transpose(x_nchw, (0, 2, 3, 1))
    x = _conv_bn_mish_ref(x, params["down"], stride=2)
    x0 = _conv_bn_mish_ref(x, params["split0"])
    x1 = _conv_bn_mish_ref(x, params["split1"])
    h = _conv_bn_mish_ref(x1, params["blk_c1"])
    x1 = _conv_bn_mish_ref(h, params["blk_c2"], residual=x1)
    x1 = _conv_bn_mish_ref(x1, params["blk_c3"])
    xc = jnp.concatenate([x0, x1], axis=-1)
    out = _conv_bn_mish_ref(xc, params["concat"])
    return jnp.transpose(out, (0, 3, 1, 2))


# ----------------------------- main ------------------------------------------

if __name__ == "__main__":
    key = jax.random.PRNGKey(0)
    k_x, k_x2, k_p = jax.random.split(key, 3)

    in_channels, out_channels = 4, 8
    params = make_csp_first_stage_params(k_p, in_channels, out_channels)

    run = jax.jit(functools.partial(csp_first_stage, params=params))

    # Tolerance reflects bf16 MXU operands (f32 accumulation) vs. an f32
    # reference across 7 stacked conv layers; logic bugs would show as O(1).
    TOL = 5e-2

    # Primary test: the module's nominal small shape.
    x = jax.random.normal(k_x, (2, in_channels, 16, 16), jnp.float32)  # NCHW
    out = run(x)
    jax.block_until_ready(out)
    ref = csp_first_stage_ref(x, params)
    assert out.shape == (2, out_channels, 8, 8), out.shape
    assert jnp.allclose(out, ref, atol=TOL, rtol=TOL), (
        float(jnp.max(jnp.abs(out - ref))))

    # Second shape: larger spatial extent and odd batch -> multi-step grid.
    x2 = jax.random.normal(k_x2, (3, in_channels, 32, 32), jnp.float32)
    out2 = run(x2)
    jax.block_until_ready(out2)
    ref2 = csp_first_stage_ref(x2, params)
    assert out2.shape == (3, out_channels, 16, 16), out2.shape
    assert jnp.allclose(out2, ref2, atol=TOL, rtol=TOL), (
        float(jnp.max(jnp.abs(out2 - ref2))))

    print("KERNEL_OK")
</pallas_src>

<mosaic_0001>
module attributes {stable_mosaic.version = 11 : i64} {
  func.func @kernel(%arg0: i32, %arg1: memref<1x36x64xbf16, #tpu.memory_space<vmem>>, %arg2: memref<8x36xbf16, #tpu.memory_space<vmem>>, %arg3: memref<16x8xbf16, #tpu.memory_space<vmem>>, %arg4: memref<8x8xbf16, #tpu.memory_space<vmem>>, %arg5: memref<8x72xbf16, #tpu.memory_space<vmem>>, %arg6: memref<8x8xbf16, #tpu.memory_space<vmem>>, %arg7: memref<8x16xbf16, #tpu.memory_space<vmem>>, %arg8: memref<16x6xf32, #tpu.memory_space<vmem>>, %arg9: memref<1x8x64xf32, #tpu.memory_space<vmem>>, %arg10: memref<8x82xf32, #tpu.memory_space<vmem>>) attributes {dimension_semantics = [#tpu.dimension_semantics<parallel>], iteration_bounds = array<i64: 2>, scalar_prefetch = 0 : i64, scratch_operands = 1 : i64, tpu.core_type = #tpu.core_type<tc>, window_params = [{transform_indices = @transform_0, window_bounds = array<i64: 1, 36, 64>}, {pipeline_mode = #tpu.pipeline_mode<synchronous>, transform_indices = @transform_1, window_bounds = array<i64: 8, 36>}, {pipeline_mode = #tpu.pipeline_mode<synchronous>, transform_indices = @transform_2, window_bounds = array<i64: 16, 8>}, {pipeline_mode = #tpu.pipeline_mode<synchronous>, transform_indices = @transform_3, window_bounds = array<i64: 8, 8>}, {pipeline_mode = #tpu.pipeline_mode<synchronous>, transform_indices = @transform_4, window_bounds = array<i64: 8, 72>}, {pipeline_mode = #tpu.pipeline_mode<synchronous>, transform_indices = @transform_5, window_bounds = array<i64: 8, 8>}, {pipeline_mode = #tpu.pipeline_mode<synchronous>, transform_indices = @transform_6, window_bounds = array<i64: 8, 16>}, {pipeline_mode = #tpu.pipeline_mode<synchronous>, transform_indices = @transform_7, window_bounds = array<i64: 16, 6>}, {transform_indices = @transform_8, window_bounds = array<i64: 1, 8, 64>}]} {
    %c0 = arith.constant 0 : index
    %c0_0 = arith.constant 0 : index
    %0 = vector.load %arg2[%c0, %c0_0] : memref<8x36xbf16, #tpu.memory_space<vmem>>, vector<8x36xbf16>
    %c0_1 = arith.constant 0 : index
    %c0_2 = arith.constant 0 : index
    %c0_3 = arith.constant 0 : index
    %1 = vector.load %arg1[%c0_1, %c0_2, %c0_3] : memref<1x36x64xbf16, #tpu.memory_space<vmem>>, vector<1x36x64xbf16>
    %2 = vector.shape_cast %1 : vector<1x36x64xbf16> to vector<36x64xbf16>
    %cst = arith.constant dense<0.000000e+00> : vector<8x64xf32>
    %3 = tpu.matmul %0, %2, %cst {dimension_numbers = #tpu.dot_dimension_numbers<[1], [0], [0], [1], [0, 0, 1, 1], [], []>} : vector<8x36xbf16>, vector<36x64xbf16>, vector<8x64xf32> -> vector<8x64xf32>
    %c0_4 = arith.constant 0 : index
    %c0_5 = arith.constant 0 : index
    %4 = vector.load %arg8[%c0_4, %c0_5] : memref<16x6xf32, #tpu.memory_space<vmem>>, vector<8x1xf32>
    %5 = vector.broadcast %4 : vector<8x1xf32> to vector<8x64xf32>
    %6 = arith.addf %3, %5 : vector<8x64xf32>
    %cst_6 = arith.constant 2.000000e+01 : f32
    %7 = vector.broadcast %cst_6 : f32 to vector<8x64xf32>
    %8 = arith.minimumf %6, %7 : vector<8x64xf32>
    %9 = math.exp %8 : vector<8x64xf32>
    %cst_7 = arith.constant 2.000000e+00 : f32
    %10 = vector.broadcast %cst_7 : f32 to vector<8x64xf32>
    %11 = arith.addf %9, %10 : vector<8x64xf32>
    %12 = arith.mulf %9, %11 : vector<8x64xf32>
    %13 = arith.mulf %6, %12 : vector<8x64xf32>
    %cst_8 = arith.constant 2.000000e+00 : f32
    %14 = vector.broadcast %cst_8 : f32 to vector<8x64xf32>
    %15 = arith.addf %12, %14 : vector<8x64xf32>
    %16 = tpu.reciprocal %15 {approx = true} : vector<8x64xf32> -> vector<8x64xf32>
    %17 = arith.mulf %13, %16 : vector<8x64xf32>
    %c0_9 = arith.constant 0 : index
    %c0_10 = arith.constant 0 : index
    %18 = vector.load %arg3[%c0_9, %c0_10] : memref<16x8xbf16, #tpu.memory_space<vmem>>, vector<16x8xbf16>
    %19 = arith.truncf %17 : vector<8x64xf32> to vector<8x64xbf16>
    %cst_11 = arith.constant dense<0.000000e+00> : vector<16x64xf32>
    %20 = tpu.matmul %18, %19, %cst_11 {dimension_numbers = #tpu.dot_dimension_numbers<[1], [0], [0], [1], [0, 0, 1, 1], [], []>} : vector<16x8xbf16>, vector<8x64xbf16>, vector<16x64xf32> -> vector<16x64xf32>
    %c0_12 = arith.constant 0 : index
    %c1 = arith.constant 1 : index
    %21 = vector.load %arg8[%c0_12, %c1] : memref<16x6xf32, #tpu.memory_space<vmem>>, vector<16x1xf32>
    %22 = vector.broadcast %21 : vector<16x1xf32> to vector<16x64xf32>
    %23 = arith.addf %20, %22 : vector<16x64xf32>
    %cst_13 = arith.constant 2.000000e+01 : f32
    %24 = vector.broadcast %cst_13 : f32 to vector<16x64xf32>
    %25 = arith.minimumf %23, %24 : vector<16x64xf32>
    %26 = math.exp %25 : vector<16x64xf32>
    %cst_14 = arith.constant 2.000000e+00 : f32
    %27 = vector.broadcast %cst_14 : f32 to vector<16x64xf32>
    %28 = arith.addf %26, %27 : vector<16x64xf32>
    %29 = arith.mulf %26, %28 : vector<16x64xf32>
    %30 = arith.mulf %23, %29 : vector<16x64xf32>
    %cst_15 = arith.constant 2.000000e+00 : f32
    %31 = vector.broadcast %cst_15 : f32 to vector<16x64xf32>
    %32 = arith.addf %29, %31 : vector<16x64xf32>
    %33 = tpu.reciprocal %32 {approx = true} : vector<16x64xf32> -> vector<16x64xf32>
    %34 = arith.mulf %30, %33 : vector<16x64xf32>
    %35 = vector.extract_strided_slice %34 {offsets = [0, 0], sizes = [8, 64], strides = [1, 1]} : vector<16x64xf32> to vector<8x64xf32>
    %36 = vector.extract_strided_slice %34 {offsets = [8, 0], sizes = [8, 64], strides = [1, 1]} : vector<16x64xf32> to vector<8x64xf32>
    %c0_16 = arith.constant 0 : index
    %c0_17 = arith.constant 0 : index
    %37 = vector.load %arg4[%c0_16, %c0_17] : memref<8x8xbf16, #tpu.memory_space<vmem>>, vector<8x8xbf16>
    %38 = arith.truncf %36 : vector<8x64xf32> to vector<8x64xbf16>
    %cst_18 = arith.constant dense<0.000000e+00> : vector<8x64xf32>
    %39 = tpu.matmul %37, %38, %cst_18 {dimension_numbers = #tpu.dot_dimension_numbers<[1], [0], [0], [1], [0, 0, 1, 1], [], []>} : vector<8x8xbf16>, vector<8x64xbf16>, vector<8x64xf32> -> vector<8x64xf32>
    %c0_19 = arith.constant 0 : index
    %c2 = arith.constant 2 : index
    %40 = vector.load %arg8[%c0_19, %c2] : memref<16x6xf32, #tpu.memory_space<vmem>>, vector<8x1xf32>
    %41 = vector.broadcast %40 : vector<8x1xf32> to vector<8x64xf32>
    %42 = arith.addf %39, %41 : vector<8x64xf32>
    %cst_20 = arith.constant 2.000000e+01 : f32
    %43 = vector.broadcast %cst_20 : f32 to vector<8x64xf32>
    %44 = arith.minimumf %42, %43 : vector<8x64xf32>
    %45 = math.exp %44 : vector<8x64xf32>
    %cst_21 = arith.constant 2.000000e+00 : f32
    %46 = vector.broadcast %cst_21 : f32 to vector<8x64xf32>
    %47 = arith.addf %45, %46 : vector<8x64xf32>
    %48 = arith.mulf %45, %47 : vector<8x64xf32>
    %49 = arith.mulf %42, %48 : vector<8x64xf32>
    %cst_22 = arith.constant 2.000000e+00 : f32
    %50 = vector.broadcast %cst_22 : f32 to vector<8x64xf32>
    %51 = arith.addf %48, %50 : vector<8x64xf32>
    %52 = tpu.reciprocal %51 {approx = true} : vector<8x64xf32> -> vector<8x64xf32>
    %53 = arith.mulf %49, %52 : vector<8x64xf32>
    %cst_23 = arith.constant 0.000000e+00 : f32
    %54 = vector.broadcast %cst_23 : f32 to vector<8x9xf32>
    %c0_24 = arith.constant 0 : index
    %c0_25 = arith.constant 0 : index
    %55 = vector.load %arg10[%c0_24, %c0_25] : memref<8x82xf32, #tpu.memory_space<vmem>>, vector<8x9xf32>
    tpu.vector_store %arg10[%c0_24, %c0_25], %54 {strides = array<i32>} : memref<8x82xf32, #tpu.memory_space<vmem>>, vector<8x9xf32>,
    %cst_26 = arith.constant 0.000000e+00 : f32
    %56 = vector.broadcast %cst_26 : f32 to vector<8x9xf32>
    %c0_27 = arith.constant 0 : index
    %c73 = arith.constant 73 : index
    %57 = vector.load %arg10[%c0_27, %c73] : memref<8x82xf32, #tpu.memory_space<vmem>>, vector<8x9xf32>
    tpu.vector_store %arg10[%c0_27, %c73], %56 {strides = array<i32>} : memref<8x82xf32, #tpu.memory_space<vmem>>, vector<8x9xf32>,
    %c0_28 = arith.constant 0 : index
    %c9 = arith.constant 9 : index
    %58 = vector.load %arg10[%c0_28, %c9] : memref<8x82xf32, #tpu.memory_space<vmem>>, vector<8x64xf32>
    tpu.vector_store %arg10[%c0_28, %c9], %53 {strides = array<i32>} : memref<8x82xf32, #tpu.memory_space<vmem>>, vector<8x64xf32>,
    %59 = tpu.iota {dimensions = array<i32: 1>} : vector<1x64xi32>
    %c8_i32 = arith.constant 8 : i32
    %c0_i32 = arith.constant 0 : i32
    %60 = arith.cmpi eq, %c8_i32, %c0_i32 : i32
    %c1_i32 = arith.constant 1 : i32
    %61 = arith.select %60, %c1_i32, %c8_i32 : i32
    %62 = vector.broadcast %61 : i32 to vector<1x64xi32>
    %63 = arith.remsi %59, %62 : vector<1x64xi32>
    %c0_i32_29 = arith.constant 0 : i32
    %64 = vector.broadcast %c0_i32_29 : i32 to vector<1x64xi32>
    %65 = arith.cmpi ne, %63, %64 : vector<1x64xi32>
    %c0_i32_30 = arith.constant 0 : i32
    %66 = vector.broadcast %c0_i32_30 : i32 to vector<1x64xi32>
    %67 = arith.cmpi slt, %63, %66 : vector<1x64xi32>
    %c0_i32_31 = arith.constant 0 : i32
    %68 = arith.cmpi slt, %61, %c0_i32_31 : i32
    %69 = vector.broadcast %68 : i1 to vector<1x64xi1>
    %70 = vector.broadcast %69 : vector<1x64xi1> to vector<1x64xi1>
    %71 = arith.xori %67, %70 : vector<1x64xi1>
    %72 = arith.andi %71, %65 : vector<1x64xi1>
    %73 = vector.broadcast %61 : i32 to vector<1x64xi32>
    %74 = arith.addi %63, %73 : vector<1x64xi32>
    %75 = arith.select %72, %74, %63 : vector<1x64xi1>, vector<1x64xi32>
    %c0_i32_32 = arith.constant 0 : i32
    %76 = vector.broadcast %c0_i32_32 : i32 to vector<1x64xi32>
    %77 = arith.cmpi ne, %75, %76 : vector<1x64xi32>
    %c7_i32 = arith.constant 7 : i32
    %78 = vector.broadcast %c7_i32 : i32 to vector<1x64xi32>
    %79 = arith.cmpi ne, %75, %78 : vector<1x64xi32>
    %c0_33 = arith.constant 0 : index
    %c0_34 = arith.constant 0 : index
    %80 = vector.load %arg10[%c0_33, %c0_34] : memref<8x82xf32, #tpu.memory_space<vmem>>, vector<8x64xf32>
    %cst_35 = arith.constant 0.000000e+00 : f32
    %81 = vector.shape_cast %77 : vector<1x64xi1> to vector<1x64xi1>
    %82 = vector.broadcast %81 : vector<1x64xi1> to vector<8x64xi1>
    %83 = vector.broadcast %cst_35 : f32 to vector<8x64xf32>
    %84 = arith.select %82, %80, %83 : vector<8x64xi1>, vector<8x64xf32>
    %c0_36 = arith.constant 0 : index
    %c1_37 = arith.constant 1 : index
    %85 = vector.load %arg10[%c0_36, %c1_37] : memref<8x82xf32, #tpu.memory_space<vmem>>, vector<8x64xf32>
    %c0_38 = arith.constant 0 : index
    %c2_39 = arith.constant 2 : index
    %86 = vector.load %arg10[%c0_38, %c2_39] : memref<8x82xf32, #tpu.memory_space<vmem>>, vector<8x64xf32>
    %cst_40 = arith.constant 0.000000e+00 : f32
    %87 = vector.shape_cast %79 : vector<1x64xi1> to vector<1x64xi1>
    %88 = vector.broadcast %87 : vector<1x64xi1> to vector<8x64xi1>
    %89 = vector.broadcast %cst_40 : f32 to vector<8x64xf32>
    %90 = arith.select %88, %86, %89 : vector<8x64xi1>, vector<8x64xf32>
    %c0_41 = arith.constant 0 : index
    %c8 = arith.constant 8 : index
    %91 = vector.load %arg10[%c0_41, %c8] : memref<8x82xf32, #tpu.memory_space<vmem>>, vector<8x64xf32>
    %cst_42 = arith.constant 0.000000e+00 : f32
    %92 = vector.shape_cast %77 : vector<1x64xi1> to vector<1x64xi1>
    %93 = vector.broadcast %92 : vector<1x64xi1> to vector<8x64xi1>
    %94 = vector.broadcast %cst_42 : f32 to vector<8x64xf32>
    %95 = arith.select %93, %91, %94 : vector<8x64xi1>, vector<8x64xf32>
    %c0_43 = arith.constant 0 : index
    %c9_44 = arith.constant 9 : index
    %96 = vector.load %arg10[%c0_43, %c9_44] : memref<8x82xf32, #tpu.memory_space<vmem>>, vector<8x64xf32>
    %c0_45 = arith.constant 0 : index
    %c10 = arith.constant 10 : index
    %97 = vector.load %arg10[%c0_45, %c10] : memref<8x82xf32, #tpu.memory_space<vmem>>, vector<8x64xf32>
    %cst_46 = arith.constant 0.000000e+00 : f32
    %98 = vector.shape_cast %79 : vector<1x64xi1> to vector<1x64xi1>
    %99 = vector.broadcast %98 : vector<1x64xi1> to vector<8x64xi1>
    %100 = vector.broadcast %cst_46 : f32 to vector<8x64xf32>
    %101 = arith.select %99, %97, %100 : vector<8x64xi1>, vector<8x64xf32>
    %c0_47 = arith.constant 0 : index
    %c16 = arith.constant 16 : index
    %102 = vector.load %arg10[%c0_47, %c16] : memref<8x82xf32, #tpu.memory_space<vmem>>, vector<8x64xf32>
    %cst_48 = arith.constant 0.000000e+00 : f32
    %103 = vector.shape_cast %77 : vector<1x64xi1> to vector<1x64xi1>
    %104 = vector.broadcast %103 : vector<1x64xi1> to vector<8x64xi1>
    %105 = vector.broadcast %cst_48 : f32 to vector<8x64xf32>
    %106 = arith.select %104, %102, %105 : vector<8x64xi1>, vector<8x64xf32>
    %c0_49 = arith.constant 0 : index
    %c17 = arith.constant 17 : index
    %107 = vector.load %arg10[%c0_49, %c17] : memref<8x82xf32, #tpu.memory_space<vmem>>, vector<8x64xf32>
    %c0_50 = arith.constant 0 : index
    %c18 = arith.constant 18 : index
    %108 = vector.load %arg10[%c0_50, %c18] : memref<8x82xf32, #tpu.memory_space<vmem>>, vector<8x64xf32>
    %cst_51 = arith.constant 0.000000e+00 : f32
    %109 = vector.shape_cast %79 : vector<1x64xi1> to vector<1x64xi1>
    %110 = vector.broadcast %109 : vector<1x64xi1> to vector<8x64xi1>
    %111 = vector.broadcast %cst_51 : f32 to vector<8x64xf32>
    %112 = arith.select %110, %108, %111 : vector<8x64xi1>, vector<8x64xf32>
    %113 = tpu.concatenate %84, %85, %90, %95, %96, %101, %106, %107, %112 in 0 : vector<8x64xf32>, vector<8x64xf32>, vector<8x64xf32>, vector<8x64xf32>, vector<8x64xf32>, vector<8x64xf32>, vector<8x64xf32>, vector<8x64xf32>, vector<8x64xf32> -> vector<72x64xf32>
    %114 = arith.truncf %113 : vector<72x64xf32> to vector<72x64xbf16>
    %c0_52 = arith.constant 0 : index
    %c0_53 = arith.constant 0 : index
    %115 = vector.load %arg5[%c0_52, %c0_53] : memref<8x72xbf16, #tpu.memory_space<vmem>>, vector<8x72xbf16>
    %cst_54 = arith.constant dense<0.000000e+00> : vector<8x64xf32>
    %116 = tpu.matmul %115, %114, %cst_54 {dimension_numbers = #tpu.dot_dimension_numbers<[1], [0], [0], [1], [0, 0, 1, 1], [], []>} : vector<8x72xbf16>, vector<72x64xbf16>, vector<8x64xf32> -> vector<8x64xf32>
    %c0_55 = arith.constant 0 : index
    %c3 = arith.constant 3 : index
    %117 = vector.load %arg8[%c0_55, %c3] : memref<16x6xf32, #tpu.memory_space<vmem>>, vector<8x1xf32>
    %118 = vector.broadcast %117 : vector<8x1xf32> to vector<8x64xf32>
    %119 = arith.addf %116, %118 : vector<8x64xf32>
    %cst_56 = arith.constant 2.000000e+01 : f32
    %120 = vector.broadcast %cst_56 : f32 to vector<8x64xf32>
    %121 = arith.minimumf %119, %120 : vector<8x64xf32>
    %122 = math.exp %121 : vector<8x64xf32>
    %cst_57 = arith.constant 2.000000e+00 : f32
    %123 = vector.broadcast %cst_57 : f32 to vector<8x64xf32>
    %124 = arith.addf %122, %123 : vector<8x64xf32>
    %125 = arith.mulf %122, %124 : vector<8x64xf32>
    %126 = arith.mulf %119, %125 : vector<8x64xf32>
    %cst_58 = arith.constant 2.000000e+00 : f32
    %127 = vector.broadcast %cst_58 : f32 to vector<8x64xf32>
    %128 = arith.addf %125, %127 : vector<8x64xf32>
    %129 = tpu.reciprocal %128 {approx = true} : vector<8x64xf32> -> vector<8x64xf32>
    %130 = arith.mulf %126, %129 : vector<8x64xf32>
    %131 = arith.addf %36, %130 : vector<8x64xf32>
    %c0_59 = arith.constant 0 : index
    %c0_60 = arith.constant 0 : index
    %132 = vector.load %arg6[%c0_59, %c0_60] : memref<8x8xbf16, #tpu.memory_space<vmem>>, vector<8x8xbf16>
    %133 = arith.truncf %131 : vector<8x64xf32> to vector<8x64xbf16>
    %cst_61 = arith.constant dense<0.000000e+00> : vector<8x64xf32>
    %134 = tpu.matmul %132, %133, %cst_61 {dimension_numbers = #tpu.dot_dimension_numbers<[1], [0], [0], [1], [0, 0, 1, 1], [], []>} : vector<8x8xbf16>, vector<8x64xbf16>, vector<8x64xf32> -> vector<8x64xf32>
    %c0_62 = arith.constant 0 : index
    %c4 = arith.constant 4 : index
    %135 = vector.load %arg8[%c0_62, %c4] : memref<16x6xf32, #tpu.memory_space<vmem>>, vector<8x1xf32>
    %136 = vector.broadcast %135 : vector<8x1xf32> to vector<8x64xf32>
    %137 = arith.addf %134, %136 : vector<8x64xf32>
    %cst_63 = arith.constant 2.000000e+01 : f32
    %138 = vector.broadcast %cst_63 : f32 to vector<8x64xf32>
    %139 = arith.minimumf %137, %138 : vector<8x64xf32>
    %140 = math.exp %139 : vector<8x64xf32>
    %cst_64 = arith.constant 2.000000e+00 : f32
    %141 = vector.broadcast %cst_64 : f32 to vector<8x64xf32>
    %142 = arith.addf %140, %141 : vector<8x64xf32>
    %143 = arith.mulf %140, %142 : vector<8x64xf32>
    %144 = arith.mulf %137, %143 : vector<8x64xf32>
    %cst_65 = arith.constant 2.000000e+00 : f32
    %145 = vector.broadcast %cst_65 : f32 to vector<8x64xf32>
    %146 = arith.addf %143, %145 : vector<8x64xf32>
    %147 = tpu.reciprocal %146 {approx = true} : vector<8x64xf32> -> vector<8x64xf32>
    %148 = arith.mulf %144, %147 : vector<8x64xf32>
    %149 = tpu.concatenate %35, %148 in 0 : vector<8x64xf32>, vector<8x64xf32> -> vector<16x64xf32>
    %150 = arith.truncf %149 : vector<16x64xf32> to vector<16x64xbf16>
    %c0_66 = arith.constant 0 : index
    %c0_67 = arith.constant 0 : index
    %151 = vector.load %arg7[%c0_66, %c0_67] : memref<8x16xbf16, #tpu.memory_space<vmem>>, vector<8x16xbf16>
    %cst_68 = arith.constant dense<0.000000e+00> : vector<8x64xf32>
    %152 = tpu.matmul %151, %150, %cst_68 {dimension_numbers = #tpu.dot_dimension_numbers<[1], [0], [0], [1], [0, 0, 1, 1], [], []>} : vector<8x16xbf16>, vector<16x64xbf16>, vector<8x64xf32> -> vector<8x64xf32>
    %c0_69 = arith.constant 0 : index
    %c5 = arith.constant 5 : index
    %153 = vector.load %arg8[%c0_69, %c5] : memref<16x6xf32, #tpu.memory_space<vmem>>, vector<8x1xf32>
    %154 = vector.broadcast %153 : vector<8x1xf32> to vector<8x64xf32>
    %155 = arith.addf %152, %154 : vector<8x64xf32>
    %cst_70 = arith.constant 2.000000e+01 : f32
    %156 = vector.broadcast %cst_70 : f32 to vector<8x64xf32>
    %157 = arith.minimumf %155, %156 : vector<8x64xf32>
    %158 = math.exp %157 : vector<8x64xf32>
    %cst_71 = arith.constant 2.000000e+00 : f32
    %159 = vector.broadcast %cst_71 : f32 to vector<8x64xf32>
    %160 = arith.addf %158, %159 : vector<8x64xf32>
    %161 = arith.mulf %158, %160 : vector<8x64xf32>
    %162 = arith.mulf %155, %161 : vector<8x64xf32>
    %cst_72 = arith.constant 2.000000e+00 : f32
    %163 = vector.broadcast %cst_72 : f32 to vector<8x64xf32>
    %164 = arith.addf %161, %163 : vector<8x64xf32>
    %165 = tpu.reciprocal %164 {approx = true} : vector<8x64xf32> -> vector<8x64xf32>
    %166 = arith.mulf %162, %165 : vector<8x64xf32>
    %c0_73 = arith.constant 0 : index
    %c0_74 = arith.constant 0 : index
    %c0_75 = arith.constant 0 : index
    %167 = vector.load %arg9[%c0_73, %c0_74, %c0_75] : memref<1x8x64xf32, #tpu.memory_space<vmem>>, vector<1x8x64xf32>
    %168 = vector.shape_cast %167 : vector<1x8x64xf32> to vector<8x64xf32>
    %169 = vector.shape_cast %166 : vector<8x64xf32> to vector<1x8x64xf32>
    tpu.vector_store %arg9[%c0_73, %c0_74, %c0_75], %169 {strides = array<i32>} : memref<1x8x64xf32, #tpu.memory_space<vmem>>, vector<1x8x64xf32>,
    return
  }
  func.func @transform_0(%arg0: i32) -> (i32, i32, i32) {
    %c0_i32 = arith.constant 0 : i32
    %c0_i32_0 = arith.constant 0 : i32
    %c0_i32_1 = arith.constant 0 : i32
    return %arg0, %c0_i32, %c0_i32_0 : i32, i32, i32
  }
  func.func @transform_1(%arg0: i32) -> (i32, i32) {
    %c0_i32 = arith.constant 0 : i32
    %c0_i32_0 = arith.constant 0 : i32
    %c0_i32_1 = arith.constant 0 : i32
    return %c0_i32, %c0_i32_0 : i32, i32
  }
  func.func @transform_2(%arg0: i32) -> (i32, i32) {
    %c0_i32 = arith.constant 0 : i32
    %c0_i32_0 = arith.constant 0 : i32
    %c0_i32_1 = arith.constant 0 : i32
    return %c0_i32, %c0_i32_0 : i32, i32
  }
  func.func @transform_3(%arg0: i32) -> (i32, i32) {
    %c0_i32 = arith.constant 0 : i32
    %c0_i32_0 = arith.constant 0 : i32
    %c0_i32_1 = arith.constant 0 : i32
    return %c0_i32, %c0_i32_0 : i32, i32
  }
  func.func @transform_4(%arg0: i32) -> (i32, i32) {
    %c0_i32 = arith.constant 0 : i32
    %c0_i32_0 = arith.constant 0 : i32
    %c0_i32_1 = arith.constant 0 : i32
    return %c0_i32, %c0_i32_0 : i32, i32
  }
  func.func @transform_5(%arg0: i32) -> (i32, i32) {
    %c0_i32 = arith.constant 0 : i32
    %c0_i32_0 = arith.constant 0 : i32
    %c0_i32_1 = arith.constant 0 : i32
    return %c0_i32, %c0_i32_0 : i32, i32
  }
  func.func @transform_6(%arg0: i32) -> (i32, i32) {
    %c0_i32 = arith.constant 0 : i32
    %c0_i32_0 = arith.constant 0 : i32
    %c0_i32_1 = arith.constant 0 : i32
    return %c0_i32, %c0_i32_0 : i32, i32
  }
  func.func @transform_7(%arg0: i32) -> (i32, i32) {
    %c0_i32 = arith.constant 0 : i32
    %c0_i32_0 = arith.constant 0 : i32
    %c0_i32_1 = arith.constant 0 : i32
    return %c0_i32, %c0_i32_0 : i32, i32
  }
  func.func @transform_8(%arg0: i32) -> (i32, i32, i32) {
    %c0_i32 = arith.constant 0 : i32
    %c0_i32_0 = arith.constant 0 : i32
    %c0_i32_1 = arith.constant 0 : i32
    return %arg0, %c0_i32, %c0_i32_0 : i32, i32, i32
  }
}

</mosaic_0001>

<llo_original>
// kernel: csp_first_stage.1
$region0: #{csp_first_stage.1}
  #allocation0 [shape = 'u32[]', space=smem, size = 0x4, offset = 0x4, fixed_abs, tag = 'smem constant byte address 0x4 - core index']
  #allocation1 [shape = 'u32[144,128]{1,0:T(1,128)}', space=vmem, size = 0x12000, scoped, tag = 'internal scratch']
  #allocation2 [shape = 'f32[8,82]{1,0:T(8,128)}', space=vmem, size = 0x1000, scoped, tag = 'scratch operand']
  %s0 = inlined_call_operand.vmem [shape: bf16[2,36,64], index: 0, kind: input, shape index: {}]
  %s1 = inlined_call_operand.vmem [shape: bf16[8,36], index: 1, kind: input, shape index: {}]
  %s2 = inlined_call_operand.vmem [shape: bf16[16,8], index: 2, kind: input, shape index: {}]
  %s3 = inlined_call_operand.vmem [shape: bf16[8,8], index: 3, kind: input, shape index: {}]
  %s4 = inlined_call_operand.vmem [shape: bf16[8,72], index: 4, kind: input, shape index: {}]
  %s5 = inlined_call_operand.vmem [shape: bf16[8,8], index: 5, kind: input, shape index: {}]
  %s6 = inlined_call_operand.vmem [shape: bf16[8,16], index: 6, kind: input, shape index: {}]
  %s7 = inlined_call_operand.vmem [shape: f32[16,6], index: 7, kind: input, shape index: {}]
  %s8 = inlined_call_operand.vmem [shape: f32[2,8,64], index: 8, kind: output, shape index: {}]
  %s9 = sld [smem:[#allocation0]]
  $region65: #{csp_first_stage.1} parent=0
    _
  %s11 = ssub.s32 1, %s9
  %s12 = scalar_select 0, %s11, %s9
  loop: start=0, step=1, limit=4
  $region2: #{csp_first_stage.1} parent=0 // loop_pre_header
    _
  $region3: #{csp_first_stage.1} parent=0 // loop_header
    %s14 = sphi 0, %s18
    %p15 = scmp.ge.s32.totalorder %s14, 4
    %s24 = sphi 0, %s26
    %s27 = sphi 0, %s24
    %s28 = sphi 0, %s27
    %s44 = sphi 0, %s28
    %s48 = sphi 0, %s48
    %s50 = sphi 0, %s48
    %s51 = sphi 0, %s50
    %s65 = sphi 0, %s51
    %s69 = sphi 0, %s69
    %s71 = sphi 0, %s69
    %s72 = sphi 0, %s71
    %s86 = sphi 0, %s72
    %s90 = sphi 0, %s90
    %s92 = sphi 0, %s90
    %s93 = sphi 0, %s92
    %s107 = sphi 0, %s93
    %s111 = sphi 0, %s111
    %s113 = sphi 0, %s111
    %s114 = sphi 0, %s113
    %s128 = sphi 0, %s114
    %s132 = sphi 0, %s132
    %s134 = sphi 0, %s132
    %s135 = sphi 0, %s134
    %s149 = sphi 0, %s135
    %s153 = sphi 0, %s153
    %s155 = sphi 0, %s153
    %s156 = sphi 0, %s155
    %s170 = sphi 0, %s156
    %s174 = sphi 0, %s174
    %s176 = sphi 0, %s174
    %s177 = sphi 0, %s176
    %s191 = sphi 0, %s177
    %s197 = sphi 0, %s199
    %s200 = sphi 0, %s197
    %s201 = sphi 0, %s200
    %s217 = sphi 0, %s201
  $region4: #{csp_first_stage.1} parent=0 // loop_header_branch
    %17 = sbr.rel (%p15) target = $region8
  $region5: #{csp_first_stage.1} parent=0 // loop_body
    %s19 = ssub.s32 %s14, 1
    %s20 = ssub.s32 %s14, 2
    %s21 = sadd.s32 %s14, 1
    %s22 = ssub.s32 %s14, %s21
    %p23 = scmp.eq.s32.totalorder %s22, 0
    %s25 = sadd.s32 %s24, 1
    %s26 = scalar_select %p23, %s24, %s25
    %p29 = pneg %p23
    %p30 = scmp.eq.s32.totalorder %s14, 1
    %p31 = por %p29, %p30
    %p32 = scmp.ne.s32.totalorder %s24, %s27
    %p33 = scmp.eq.s32.totalorder %s14, 0
    %p34 = por %p32, %p33
    %p35 = scmp.ne.s32.totalorder %s24, %s27
    %p36 = scmp.eq.s32.totalorder %s19, 1
    %p37 = por %p35, %p36
    %p38 = scmp.ne.s32.totalorder %s27, %s28
    %p39 = scmp.eq.s32.totalorder %s19, 0
    %p40 = por %p38, %p39
    %p41 = scmp.ne.s32.totalorder %s27, %s28
    %p42 = scmp.eq.s32.totalorder %s20, 1
    %p43 = por %p41, %p42
    %p45 = scmp.ne.s32.totalorder %s28, %s44
    %p46 = scmp.eq.s32.totalorder %s20, 0
    %p47 = por %p45, %p46
    %s49 = sadd.s32 %s48, 1
    %p52 = scmp.eq.s32.totalorder %s14, 1
    %p53 = scmp.ne.s32.totalorder %s48, %s50
    %p54 = scmp.eq.s32.totalorder %s14, 0
    %p55 = por %p53, %p54
    %p56 = scmp.ne.s32.totalorder %s48, %s50
    %p57 = scmp.eq.s32.totalorder %s19, 1
    %p58 = por %p56, %p57
    %p59 = scmp.ne.s32.totalorder %s50, %s51
    %p60 = scmp.eq.s32.totalorder %s19, 0
    %p61 = por %p59, %p60
    %p62 = scmp.ne.s32.totalorder %s50, %s51
    %p63 = scmp.eq.s32.totalorder %s20, 1
    %p64 = por %p62, %p63
    %p66 = scmp.ne.s32.totalorder %s51, %s65
    %p67 = scmp.eq.s32.totalorder %s20, 0
    %p68 = por %p66, %p67
    %s70 = sadd.s32 %s69, 1
    %p73 = scmp.eq.s32.totalorder %s14, 1
    %p74 = scmp.ne.s32.totalorder %s69, %s71
    %p75 = scmp.eq.s32.totalorder %s14, 0
    %p76 = por %p74, %p75
    %p77 = scmp.ne.s32.totalorder %s69, %s71
    %p78 = scmp.eq.s32.totalorder %s19, 1
    %p79 = por %p77, %p78
    %p80 = scmp.ne.s32.totalorder %s71, %s72
    %p81 = scmp.eq.s32.totalorder %s19, 0
    %p82 = por %p80, %p81
    %p83 = scmp.ne.s32.totalorder %s71, %s72
    %p84 = scmp.eq.s32.totalorder %s20, 1
    %p85 = por %p83, %p84
    %p87 = scmp.ne.s32.totalorder %s72, %s86
    %p88 = scmp.eq.s32.totalorder %s20, 0
    %p89 = por %p87, %p88
    %s91 = sadd.s32 %s90, 1
    %p94 = scmp.eq.s32.totalorder %s14, 1
    %p95 = scmp.ne.s32.totalorder %s90, %s92
    %p96 = scmp.eq.s32.totalorder %s14, 0
    %p97 = por %p95, %p96
    %p98 = scmp.ne.s32.totalorder %s90, %s92
    %p99 = scmp.eq.s32.totalorder %s19, 1
    %p100 = por %p98, %p99
    %p101 = scmp.ne.s32.totalorder %s92, %s93
    %p102 = scmp.eq.s32.totalorder %s19, 0
    %p103 = por %p101, %p102
    %p104 = scmp.ne.s32.totalorder %s92, %s93
    %p105 = scmp.eq.s32.totalorder %s20, 1
    %p106 = por %p104, %p105
    %p108 = scmp.ne.s32.totalorder %s93, %s107
    %p109 = scmp.eq.s32.totalorder %s20, 0
    %p110 = por %p108, %p109
    %s112 = sadd.s32 %s111, 1
    %p115 = scmp.eq.s32.totalorder %s14, 1
    %p116 = scmp.ne.s32.totalorder %s111, %s113
    %p117 = scmp.eq.s32.totalorder %s14, 0
    %p118 = por %p116, %p117
    %p119 = scmp.ne.s32.totalorder %s111, %s113
    %p120 = scmp.eq.s32.totalorder %s19, 1
    %p121 = por %p119, %p120
    %p122 = scmp.ne.s32.totalorder %s113, %s114
    %p123 = scmp.eq.s32.totalorder %s19, 0
    %p124 = por %p122, %p123
    %p125 = scmp.ne.s32.totalorder %s113, %s114
    %p126 = scmp.eq.s32.totalorder %s20, 1
    %p127 = por %p125, %p126
    %p129 = scmp.ne.s32.totalorder %s114, %s128
    %p130 = scmp.eq.s32.totalorder %s20, 0
    %p131 = por %p129, %p130
    %s133 = sadd.s32 %s132, 1
    %p136 = scmp.eq.s32.totalorder %s14, 1
    %p137 = scmp.ne.s32.totalorder %s132, %s134
    %p138 = scmp.eq.s32.totalorder %s14, 0
    %p139 = por %p137, %p138
    %p140 = scmp.ne.s32.totalorder %s132, %s134
    %p141 = scmp.eq.s32.totalorder %s19, 1
    %p142 = por %p140, %p141
    %p143 = scmp.ne.s32.totalorder %s134, %s135
    %p144 = scmp.eq.s32.totalorder %s19, 0
    %p145 = por %p143, %p144
    %p146 = scmp.ne.s32.totalorder %s134, %s135
    %p147 = scmp.eq.s32.totalorder %s20, 1
    %p148 = por %p146, %p147
    %p150 = scmp.ne.s32.totalorder %s135, %s149
    %p151 = scmp.eq.s32.totalorder %s20, 0
    %p152 = por %p150, %p151
    %s154 = sadd.s32 %s153, 1
    %p157 = scmp.eq.s32.totalorder %s14, 1
    %p158 = scmp.ne.s32.totalorder %s153, %s155
    %p159 = scmp.eq.s32.totalorder %s14, 0
    %p160 = por %p158, %p159
    %p161 = scmp.ne.s32.totalorder %s153, %s155
    %p162 = scmp.eq.s32.totalorder %s19, 1
    %p163 = por %p161, %p162
    %p164 = scmp.ne.s32.totalorder %s155, %s156
    %p165 = scmp.eq.s32.totalorder %s19, 0
    %p166 = por %p164, %p165
    %p167 = scmp.ne.s32.totalorder %s155, %s156
    %p168 = scmp.eq.s32.totalorder %s20, 1
    %p169 = por %p167, %p168
    %p171 = scmp.ne.s32.totalorder %s156, %s170
    %p172 = scmp.eq.s32.totalorder %s20, 0
    %p173 = por %p171, %p172
    %s175 = sadd.s32 %s174, 1
    %p178 = scmp.eq.s32.totalorder %s14, 1
    %p179 = scmp.ne.s32.totalorder %s174, %s176
    %p180 = scmp.eq.s32.totalorder %s14, 0
    %p181 = por %p179, %p180
    %p182 = scmp.ne.s32.totalorder %s174, %s176
    %p183 = scmp.eq.s32.totalorder %s19, 1
    %p184 = por %p182, %p183
    %p185 = scmp.ne.s32.totalorder %s176, %s177
    %p186 = scmp.eq.s32.totalorder %s19, 0
    %p187 = por %p185, %p186
    %p188 = scmp.ne.s32.totalorder %s176, %s177
    %p189 = scmp.eq.s32.totalorder %s20, 1
    %p190 = por %p188, %p189
    %p192 = scmp.ne.s32.totalorder %s177, %s191
    %p193 = scmp.eq.s32.totalorder %s20, 0
    %p194 = por %p192, %p193
    %s195 = ssub.s32 %s14, %s21
    %p196 = scmp.eq.s32.totalorder %s195, 0
    %s198 = sadd.s32 %s197, 1
    %s199 = scalar_select %p196, %s197, %s198
    %p202 = pneg %p196
    %p203 = scmp.eq.s32.totalorder %s14, 1
    %p204 = por %p202, %p203
    %p205 = scmp.ne.s32.totalorder %s197, %s200
    %p206 = scmp.eq.s32.totalorder %s14, 0
    %p207 = por %p205, %p206
    %p208 = scmp.ne.s32.totalorder %s197, %s200
    %p209 = scmp.eq.s32.totalorder %s19, 1
    %p210 = por %p208, %p209
    %p211 = scmp.ne.s32.totalorder %s200, %s201
    %p212 = scmp.eq.s32.totalorder %s19, 0
    %p213 = por %p211, %p212
    %p214 = scmp.ne.s32.totalorder %s200, %s201
    %p215 = scmp.eq.s32.totalorder %s20, 1
    %p216 = por %p214, %p215
    %p218 = scmp.ne.s32.totalorder %s201, %s217
    %p219 = scmp.eq.s32.totalorder %s20, 0
    %p220 = por %p218, %p219
    %p221 = scmp.le.s32.totalorder 1, %s14
    %p222 = scmp.lt.s32.totalorder %s14, 3
    %p223 = pnand %p221, %p222
    %p224 = pneg %p223
    // Predicated region
    $region9: #{csp_first_stage.1} parent=5 // pred_check
      _
    $region10: #{csp_first_stage.1} parent=5 // pred_check_branch
      %226 = sbr.rel (%p223) target = $region12
    $region11: #{csp_first_stage.1} parent=5 // pred_region
      %s227 = ssub.s32 %s14, 1
      // Predicated region
      $region13: #{csp_first_stage.1} parent=11 // pred_check
        %p228 = pneg %p61
      $region14: #{csp_first_stage.1} parent=11 // pred_check_branch
        %230 = sbr.rel (%p228) target = $region16
      $region15: #{csp_first_stage.1} parent=11 // pred_region
        _
      $region16: #{csp_first_stage.1} parent=11 // pred_fallthru
        _
      // Predicated region
      $region17: #{csp_first_stage.1} parent=11 // pred_check
        %p231 = pneg %p82
      $region18: #{csp_first_stage.1} parent=11 // pred_check_branch
        %233 = sbr.rel (%p231) target = $region20
      $region19: #{csp_first_stage.1} parent=11 // pred_region
        _
      $region20: #{csp_first_stage.1} parent=11 // pred_fallthru
        _
      // Predicated region
      $region21: #{csp_first_stage.1} parent=11 // pred_check
        %p234 = pneg %p103
      $region22: #{csp_first_stage.1} parent=11 // pred_check_branch
        %236 = sbr.rel (%p234) target = $region24
      $region23: #{csp_first_stage.1} parent=11 // pred_region
        _
      $region24: #{csp_first_stage.1} parent=11 // pred_fallthru
        _
      // Predicated region
      $region25: #{csp_first_stage.1} parent=11 // pred_check
        %p237 = pneg %p124
      $region26: #{csp_first_stage.1} parent=11 // pred_check_branch
        %239 = sbr.rel (%p237) target = $region28
      $region27: #{csp_first_stage.1} parent=11 // pred_region
        _
      $region28: #{csp_first_stage.1} parent=11 // pred_fallthru
        _
      // Predicated region
      $region29: #{csp_first_stage.1} parent=11 // pred_check
        %p240 = pneg %p145
      $region30: #{csp_first_stage.1} parent=11 // pred_check_branch
        %242 = sbr.rel (%p240) target = $region32
      $region31: #{csp_first_stage.1} parent=11 // pred_region
        _
      $region32: #{csp_first_stage.1} parent=11 // pred_fallthru
        _
      // Predicated region
      $region33: #{csp_first_stage.1} parent=11 // pred_check
        %p243 = pneg %p166
      $region34: #{csp_first_stage.1} parent=11 // pred_check_branch
        %245 = sbr.rel (%p243) target = $region36
      $region35: #{csp_first_stage.1} parent=11 // pred_region
        _
      $region36: #{csp_first_stage.1} parent=11 // pred_fallthru
        _
      // Predicated region
      $region37: #{csp_first_stage.1} parent=11 // pred_check
        %p246 = pneg %p187
      $region38: #{csp_first_stage.1} parent=11 // pred_check_branch
        %248 = sbr.rel (%p246) target = $region40
      $region39: #{csp_first_stage.1} parent=11 // pred_region
        _
      $region40: #{csp_first_stage.1} parent=11 // pred_fallthru
        _
    $region12: #{csp_first_stage.1} parent=5 // pred_fallthru
      _
    %p249 = scmp.lt.s32.totalorder %s14, 2
    // Predicated region
    $region41: #{csp_first_stage.1} parent=5 // pred_check
      %p250 = pneg %p249
    $region42: #{csp_first_stage.1} parent=5 // pred_check_branch
      %252 = sbr.rel (%p250) target = $region44
    $region43: #{csp_first_stage.1} parent=5 // pred_region
      // Predicated region
      $region45: #{csp_first_stage.1} parent=43 // pred_check
        %p253 = pneg %p34
      $region46: #{csp_first_stage.1} parent=43 // pred_check_branch
        %255 = sbr.rel (%p253) target = $region48
      $region47: #{csp_first_stage.1} parent=43 // pred_region
        %p256 = scmp.lt.s32.totalorder %s14, 1
        %s257 = scalar_select %p256, %s14, 1
        %s258 = smul.addr %s257, 5
        %s259 = smul.addr %s258, 4
        %s260 = scalar_lea.vmem %s0, %s259
      $region48: #{csp_first_stage.1} parent=43 // pred_fallthru
        _
    $region44: #{csp_first_stage.1} parent=5 // pred_fallthru
      _
    %p261 = scmp.le.s32.totalorder 1, %s14
    %p262 = scmp.lt.s32.totalorder %s14, 3
    %p263 = pnand %p261, %p262
    %p264 = pneg %p263
    // Predicated region
    $region49: #{csp_first_stage.1} parent=5 // pred_check
      _
    $region50: #{csp_first_stage.1} parent=5 // pred_check_branch
      %266 = sbr.rel (%p263) target = $region52
    $region51: #{csp_first_stage.1} parent=5 // pred_region
      %s267 = ssub.s32 %s14, 1
      %p268 = scmp.lt.s32.totalorder %s19, 1
      %s269 = scalar_select %p268, %s19, 1
      %s270 = smul.addr %s269, 5
      %s271 = smul.addr %s270, 4
      %s272 = scalar_lea.vmem %s0, %s271
      %p273 = pneg %p40
      %p274 = pneg %p37
      %p275 = pneg %p61
      %p276 = pneg %p58
      %p277 = pneg %p82
      %p278 = pneg %p79
      %p279 = pneg %p103
      %p280 = pneg %p100
      %p281 = pneg %p124
      %p282 = pneg %p121
      %p283 = pneg %p145
      %p284 = pneg %p142
      %p285 = pneg %p166
      %p286 = pneg %p163
      %p287 = pneg %p187
      %p288 = pneg %p184
      %p289 = pneg %p213
      %p290 = pneg %p210
      %p291 = scmp.lt.s32.totalorder %s19, 1
      %s292 = scalar_select %p291, %s19, 1
      %s293 = smul.addr %s292, 8
      %s294 = scalar_lea.vmem %s8, %s293
      %p295 = scmp.lt.s32.totalorder %s19, 1
      %s296 = scalar_select %p295, %s19, 1
      %s297 = smul.addr %s296, 5
      %s298 = smul.addr %s297, 4
      %s299 = scalar_lea.vmem %s0, %s298
      %p300 = scmp.lt.s32.totalorder %s19, 1
      %s301 = scalar_select %p300, %s19, 1
      %s302 = smul.addr %s301, 8
      %s303 = scalar_lea.vmem %s8, %s302
      %v305 = vld [vmem:[%s1] sm:$0xf]
      %v306 = vld [vmem:[%s299] sm:$0xf]
      %v307 = vld [vmem:[%s299 + $0x4] sm:$0xf]
      %v308 = vld [vmem:[%s299 + $0x8] sm:$0xf]
      %v309 = vld [vmem:[%s299 + $0xc] sm:$0xf]
      %v310 = vld [vmem:[%s299 + $0x10] sm:$0x3]
      %v311 = vld [vmem:[%s7] sm:$0xff]
      %313 = vset.pattern.permute.xlu0 0
      %314 = vperm.xlu0 %313, %v311
      %v315 = vpop.permute.xlu0 %314
      %v322 = vunpack.c.l.b16 %v306
      %v323 = vunpack.c.l.b16 %v307
      %v324 = vunpack.c.l.b16 %v308
      %v325 = vunpack.c.l.b16 %v309
      %v326 = vunpack.c.l.b16 %v310
      %v327 = vpack.c.b16 %v323, %v322
      %v328 = vpack.c.b16 %v325, %v324
      %v329 = vpack.c.b16 %v326, %v326
      %vm332 = vcmask 293888
      %v334 = vsel %vm332, %v305, 0
      %vm336 = vcmask 1041408
      %v338 = vsel %vm336, %v329, 0
      %340 = vmatprep.subr.bf16.mxu0 0
      %341 = vmatpush1.bf16.msra.mxu0 %v327
      %342 = vmatprep.subr.bf16.mxu0 0
      %343 = vmatpush1.bf16.msra.mxu0 %v328
      %344 = vmatprep.subr.bf16.mxu0 0
      %345 = vmatpush1.bf16.msra.mxu0 %v338
      %346 = vmatprep.subr.bf16.mxu0 0
      %347 = vmatpush1.bf16.msra.mxu0 0
      %348 = vmatprep.subr.bf16.mxu0 0
      %349 = vmatpush1.bf16.msra.mxu0 0
      %350 = vmatprep.subr.bf16.mxu0 0
      %351 = vmatpush1.bf16.msra.mxu0 0
      %352 = vmatprep.subr.bf16.mxu0 0
      %353 = vmatpush1.bf16.msra.mxu0 0
      %354 = vmatprep.subr.bf16.mxu0 0
      %355 = vmatpush1.bf16.msra.mxu0 0
      %356 = vmatprep.subr.bf16.mxu0 0
      %357 = vmatpush1.bf16.msra.mxu0 0
      %358 = vmatprep.subr.bf16.mxu0 0
      %359 = vmatpush1.bf16.msra.mxu0 0
      %360 = vmatprep.subr.bf16.mxu0 0
      %361 = vmatpush1.bf16.msra.mxu0 0
      %362 = vmatprep.subr.bf16.mxu0 0
      %363 = vmatpush1.bf16.msra.mxu0 0
      %364 = vmatprep.subr.bf16.mxu0 0
      %365 = vmatpush1.bf16.msra.mxu0 0
      %366 = vmatprep.subr.bf16.mxu0 0
      %367 = vmatpush1.bf16.msra.mxu0 0
      %368 = vmatprep.subr.bf16.mxu0 0
      %369 = vmatpush1.bf16.msra.mxu0 0
      %370 = vmatprep.subr.bf16.mxu0 0
      %371 = vmatpush1.bf16.msra.mxu0 0
      %372 = vmatprep.mubr.bf16.mxu0 0
      %373 = vmatmul.mubr.bf16.gmra.mrb[0].mxu0 %v334
      %v374 = vpop.f32.mrb[0].mxu0
      %v375 = vadd.f32 %v315, %v374
      %v376 = vpop.f32.mrb[0].mxu0
      %v377 = vpop.f32.mrb[0].mxu0
      %v378 = vpop.f32.mrb[0].mxu0
      %379 = vdwg.mxu0
      %v380 = vmin.f32 %v375, 20.0
      %v381 = vmul.f32 %v380, 1.442695
      %v382 = vpow.pop %v381
      %v383 = vadd.f32 %v382, 2.0
      %v384 = vmul.f32 %v382, %v383
      %v385 = vmul.f32 %v375, %v384
      %v386 = vadd.f32 %v384, 2.0
      %v387 = vrcp.pop %v386
      %v388 = vmul.f32 %v385, %v387
      %v389 = vld [vmem:[%s2] sm:$0xf]
      %v390 = vld [vmem:[%s2 + $0x4] sm:$0xf]
      %v391 = vpack.c.bf16 %v388, %v388
      %v392 = vld [vmem:[%s7] sm:$0xff]
      %v393 = vld [vmem:[%s7 + $0x8] sm:$0xff]
      %395 = vset.pattern.permute.xlu0 1
      %396 = vperm.xlu0 %395, %v392
      %v397 = vpop.permute.xlu0 %396
      %400 = vset.pattern.permute.xlu0 1
      %401 = vperm.xlu0 %400, %v393
      %v402 = vpop.permute.xlu0 %401
      %v406 = vunpack.c.l.b16 %v389
      %v407 = vunpack.c.l.b16 %v390
      %v408 = vpack.c.b16 %v407, %v406
      %vm409 = vcmask 64512
      %v411 = vsel %vm409, %v408, 0
      %vm413 = vcmask 1043456
      %v415 = vsel %vm413, %v391, 0
      %417 = vmatprep.subr.bf16.mxu0 0
      %418 = vmatpush1.bf16.msra.mxu0 %v415
      %419 = vmatprep.subr.bf16.mxu0 0
      %420 = vmatpush1.bf16.msra.mxu0 0
      %421 = vmatprep.subr.bf16.mxu0 0
      %422 = vmatpush1.bf16.msra.mxu0 0
      %423 = vmatprep.subr.bf16.mxu0 0
      %424 = vmatpush1.bf16.msra.mxu0 0
      %425 = vmatprep.subr.bf16.mxu0 0
      %426 = vmatpush1.bf16.msra.mxu0 0
      %427 = vmatprep.subr.bf16.mxu0 0
      %428 = vmatpush1.bf16.msra.mxu0 0
      %429 = vmatprep.subr.bf16.mxu0 0
      %430 = vmatpush1.bf16.msra.mxu0 0
      %431 = vmatprep.subr.bf16.mxu0 0
      %432 = vmatpush1.bf16.msra.mxu0 0
      %433 = vmatprep.subr.bf16.mxu0 0
      %434 = vmatpush1.bf16.msra.mxu0 0
      %435 = vmatprep.subr.bf16.mxu0 0
      %436 = vmatpush1.bf16.msra.mxu0 0
      %437 = vmatprep.subr.bf16.mxu0 0
      %438 = vmatpush1.bf16.msra.mxu0 0
      %439 = vmatprep.subr.bf16.mxu0 0
      %440 = vmatpush1.bf16.msra.mxu0 0
      %441 = vmatprep.subr.bf16.mxu0 0
      %442 = vmatpush1.bf16.msra.mxu0 0
      %443 = vmatprep.subr.bf16.mxu0 0
      %444 = vmatpush1.bf16.msra.mxu0 0
      %445 = vmatprep.subr.bf16.mxu0 0
      %446 = vmatpush1.bf16.msra.mxu0 0
      %447 = vmatprep.subr.bf16.mxu0 0
      %448 = vmatpush1.bf16.msra.mxu0 0
      %449 = vmatprep.mubr.bf16.mxu0 0
      %450 = vmatmul.mubr.bf16.gmra.mrb[0].mxu0 %v411
      %v451 = vpop.f32.mrb[0].mxu0
      %v452 = vadd.f32 %v397, %v451
      %v453 = vpop.f32.mrb[0].mxu0
      %v454 = vpop.f32.mrb[0].mxu0
      %v455 = vadd.f32 %v402, %v454
      %v456 = vpop.f32.mrb[0].mxu0
      %457 = vdwg.mxu0
      %v458 = vmin.f32 %v452, 20.0
      %v459 = vmin.f32 %v455, 20.0
      %v460 = vmul.f32 %v458, 1.442695
      %v461 = vpow.pop %v460
      %v462 = vmul.f32 %v459, 1.442695
      %v463 = vpow.pop %v462
      %v464 = vadd.f32 %v461, 2.0
      %v465 = vadd.f32 %v463, 2.0
      %v466 = vmul.f32 %v461, %v464
      %v467 = vmul.f32 %v463, %v465
      %v468 = vmul.f32 %v452, %v466
      %v469 = vmul.f32 %v455, %v467
      %v470 = vadd.f32 %v466, 2.0
      %v471 = vadd.f32 %v467, 2.0
      %v472 = vrcp.pop %v470
      %v473 = vrcp.pop %v471
      %v474 = vmul.f32 %v468, %v472
      %v475 = vmul.f32 %v469, %v473
      %v476 = vld [vmem:[%s3] sm:$0xf]
      %v477 = vpack.c.bf16 %v475, %v475
      %478 = vset.pattern.permute.xlu0 2
      %479 = vperm.xlu0 %478, %v311
      %v480 = vpop.permute.xlu0 %479
      %v483 = vsel %vm409, %v476, 0
      %v486 = vsel %vm413, %v477, 0
      %488 = vmatprep.subr.bf16.mxu0 0
      %489 = vmatpush1.bf16.msra.mxu0 %v486
      %490 = vmatprep.subr.bf16.mxu0 0
      %491 = vmatpush1.bf16.msra.mxu0 0
      %492 = vmatprep.subr.bf16.mxu0 0
      %493 = vmatpush1.bf16.msra.mxu0 0
      %494 = vmatprep.subr.bf16.mxu0 0
      %495 = vmatpush1.bf16.msra.mxu0 0
      %496 = vmatprep.subr.bf16.mxu0 0
      %497 = vmatpush1.bf16.msra.mxu0 0
      %498 = vmatprep.subr.bf16.mxu0 0
      %499 = vmatpush1.bf16.msra.mxu0 0
      %500 = vmatprep.subr.bf16.mxu0 0
      %501 = vmatpush1.bf16.msra.mxu0 0
      %502 = vmatprep.subr.bf16.mxu0 0
      %503 = vmatpush1.bf16.msra.mxu0 0
      %504 = vmatprep.subr.bf16.mxu0 0
      %505 = vmatpush1.bf16.msra.mxu0 0
      %506 = vmatprep.subr.bf16.mxu0 0
      %507 = vmatpush1.bf16.msra.mxu0 0
      %508 = vmatprep.subr.bf16.mxu0 0
      %509 = vmatpush1.bf16.msra.mxu0 0
      %510 = vmatprep.subr.bf16.mxu0 0
      %511 = vmatpush1.bf16.msra.mxu0 0
      %512 = vmatprep.subr.bf16.mxu0 0
      %513 = vmatpush1.bf16.msra.mxu0 0
      %514 = vmatprep.subr.bf16.mxu0 0
      %515 = vmatpush1.bf16.msra.mxu0 0
      %516 = vmatprep.subr.bf16.mxu0 0
      %517 = vmatpush1.bf16.msra.mxu0 0
      %518 = vmatprep.subr.bf16.mxu0 0
      %519 = vmatpush1.bf16.msra.mxu0 0
      %520 = vmatprep.mubr.bf16.mxu0 0
      %521 = vmatmul.mubr.bf16.gmra.mrb[0].mxu0 %v483
      %v522 = vpop.f32.mrb[0].mxu0
      %v523 = vadd.f32 %v480, %v522
      %v524 = vpop.f32.mrb[0].mxu0
      %v525 = vpop.f32.mrb[0].mxu0
      %v526 = vpop.f32.mrb[0].mxu0
      %527 = vdwg.mxu0
      %v528 = vmin.f32 %v523, 20.0
      %v529 = vmul.f32 %v528, 1.442695
      %v530 = vpow.pop %v529
      %v531 = vadd.f32 %v530, 2.0
      %v532 = vmul.f32 %v530, %v531
      %v533 = vmul.f32 %v523, %v532
      %v534 = vadd.f32 %v532, 2.0
      %v535 = vrcp.pop %v534
      %v536 = vmul.f32 %v533, %v535
      %vm537 = vcmask 72704
      %538 = vst.msk [vmem:[#allocation2] sm:$0xff] %vm537, 0.0
      %vm539 = vcmask 671304
      %540 = vst.msk [vmem:[#allocation2] sm:$0xff] %vm539, 0.0
      %542 = vrot.lane.b32.xlu0 %v536, 9
      %v543 = vpop.permute.xlu0 %542
      %vm545 = vcmask 597064
      %546 = vst.msk [vmem:[#allocation2] sm:$0xff] %vm545, %v543
      %v547 = vlaneseq
      %v548 = vand.u32 %v547, 127
      %vm549 = vcmp.lt.s32.totalorder %v548, 0
      %v550 = vsub.s32 0, %v548
      %v551 = vsel %vm549, %v550, %v548
      %v552 = vshrl.u32 %v551, 3
      %v553 = vand.u32 %v551, 7
      %v554 = vsub.s32 0, %v553
      %v555 = vsel %vm549, %v554, %v553
      %vm556 = vcmp.ne.s32.totalorder %v555, 0
      %vm557 = vcmp.lt.s32.totalorder %v555, 0
      %vm558 = vmand %vm557, %vm556
      %v559 = vadd.s32 %v555, 8
      %v560 = vsel %vm558, %v559, %v555
      %vm561 = vcmp.ne.s32.totalorder %v560, 0
      %vm562 = vcmp.ne.s32.totalorder %v560, 7
      %v563 = vld [vmem:[#allocation2] sm:$0xff]
      %v564 = vsel %vm561, 1, 0
      %vm565 = vcmp.eq.s32.totalorder %v564, 1
      %v566 = vsel %vm565, %v563, 0.0
      %v567 = vsel %vm562, 1, 0
      %vm568 = vcmp.eq.s32.totalorder %v567, 1
      %570 = vrot.lane.b32.xlu0 %v563, 126
      %v571 = vpop.permute.xlu0 %570
      %v573 = vsel %vm568, %v571, 0.0
      %574 = vrot.lane.b32.xlu0 %v563, 120
      %v575 = vpop.permute.xlu0 %574
      %v577 = vsel %vm565, %v575, 0.0
      %578 = vrot.lane.b32.xlu0 %v563, 118
      %v579 = vpop.permute.xlu0 %578
      %v581 = vsel %vm568, %v579, 0.0
      %582 = vrot.lane.b32.xlu0 %v563, 112
      %v583 = vpop.permute.xlu0 %582
      %v585 = vsel %vm565, %v583, 0.0
      %586 = vrot.lane.b32.xlu0 %v563, 110
      %v587 = vpop.permute.xlu0 %586
      %v589 = vsel %vm568, %v587, 0.0
      %590 = vrot.lane.b32.xlu0 %v563, 127
      %v591 = vpop.permute.xlu0 %590
      %593 = vrot.lane.b32.xlu0 %v563, 119
      %v594 = vpop.permute.xlu0 %593
      %596 = vrot.lane.b32.xlu0 %v563, 111
      %v597 = vpop.permute.xlu0 %596
      %v599 = vpack.c.bf16 %v591, %v566
      %v600 = vpack.c.bf16 %v577, %v573
      %v601 = vpack.c.bf16 %v581, %v594
      %v602 = vpack.c.bf16 %v597, %v585
      %v603 = vpack.c.bf16 %v589, %v589
      %v604 = vld [vmem:[%s4] sm:$0xf]
      %v605 = vld [vmem:[%s7] sm:$0xff]
      %607 = vset.pattern.permute.xlu0 3
      %608 = vperm.xlu0 %607, %v605
      %v609 = vpop.permute.xlu0 %608
      %vm611 = vcmask 588800
      %v613 = vsel %vm611, %v604, 0
      %v616 = vsel %vm413, %v603, 0
      %618 = vmatprep.subr.bf16.mxu0 0
      %619 = vmatpush1.bf16.msra.mxu0 %v599
      %620 = vmatprep.subr.bf16.mxu0 0
      %621 = vmatpush1.bf16.msra.mxu0 %v600
      %622 = vmatprep.subr.bf16.mxu0 0
      %623 = vmatpush1.bf16.msra.mxu0 %v601
      %624 = vmatprep.subr.bf16.mxu0 0
      %625 = vmatpush1.bf16.msra.mxu0 %v602
      %626 = vmatprep.subr.bf16.mxu0 0
      %627 = vmatpush1.bf16.msra.mxu0 %v616
      %628 = vmatprep.subr.bf16.mxu0 0
      %629 = vmatpush1.bf16.msra.mxu0 0
      %630 = vmatprep.subr.bf16.mxu0 0
      %631 = vmatpush1.bf16.msra.mxu0 0
      %632 = vmatprep.subr.bf16.mxu0 0
      %633 = vmatpush1.bf16.msra.mxu0 0
      %634 = vmatprep.subr.bf16.mxu0 0
      %635 = vmatpush1.bf16.msra.mxu0 0
      %636 = vmatprep.subr.bf16.mxu0 0
      %637 = vmatpush1.bf16.msra.mxu0 0
      %638 = vmatprep.subr.bf16.mxu0 0
      %639 = vmatpush1.bf16.msra.mxu0 0
      %640 = vmatprep.subr.bf16.mxu0 0
      %641 = vmatpush1.bf16.msra.mxu0 0
      %642 = vmatprep.subr.bf16.mxu0 0
      %643 = vmatpush1.bf16.msra.mxu0 0
      %644 = vmatprep.subr.bf16.mxu0 0
      %645 = vmatpush1.bf16.msra.mxu0 0
      %646 = vmatprep.subr.bf16.mxu0 0
      %647 = vmatpush1.bf16.msra.mxu0 0
      %648 = vmatprep.subr.bf16.mxu0 0
      %649 = vmatpush1.bf16.msra.mxu0 0
      %650 = vmatprep.mubr.bf16.mxu0 0
      %651 = vmatmul.mubr.bf16.gmra.mrb[0].mxu0 %v613
      %v652 = vpop.f32.mrb[0].mxu0
      %v653 = vadd.f32 %v609, %v652
      %v654 = vpop.f32.mrb[0].mxu0
      %v655 = vpop.f32.mrb[0].mxu0
      %v656 = vpop.f32.mrb[0].mxu0
      %657 = vdwg.mxu0
      %v658 = vmin.f32 %v653, 20.0
      %v659 = vmul.f32 %v658, 1.442695
      %v660 = vpow.pop %v659
      %v661 = vadd.f32 %v660, 2.0
      %v662 = vmul.f32 %v660, %v661
      %v663 = vmul.f32 %v653, %v662
      %v664 = vadd.f32 %v662, 2.0
      %v665 = vrcp.pop %v664
      %v666 = vmul.f32 %v663, %v665
      %v667 = vadd.f32 %v475, %v666
      %v668 = vld [vmem:[%s5] sm:$0xf]
      %v669 = vpack.c.bf16 %v667, %v667
      %670 = vset.pattern.permute.xlu0 4
      %671 = vperm.xlu0 %670, %v605
      %v672 = vpop.permute.xlu0 %671
      %v675 = vsel %vm409, %v668, 0
      %v678 = vsel %vm413, %v669, 0
      %680 = vmatprep.subr.bf16.mxu0 0
      %681 = vmatpush1.bf16.msra.mxu0 %v678
      %682 = vmatprep.subr.bf16.mxu0 0
      %683 = vmatpush1.bf16.msra.mxu0 0
      %684 = vmatprep.subr.bf16.mxu0 0
      %685 = vmatpush1.bf16.msra.mxu0 0
      %686 = vmatprep.subr.bf16.mxu0 0
      %687 = vmatpush1.bf16.msra.mxu0 0
      %688 = vmatprep.subr.bf16.mxu0 0
      %689 = vmatpush1.bf16.msra.mxu0 0
      %690 = vmatprep.subr.bf16.mxu0 0
      %691 = vmatpush1.bf16.msra.mxu0 0
      %692 = vmatprep.subr.bf16.mxu0 0
      %693 = vmatpush1.bf16.msra.mxu0 0
      %694 = vmatprep.subr.bf16.mxu0 0
      %695 = vmatpush1.bf16.msra.mxu0 0
      %696 = vmatprep.subr.bf16.mxu0 0
      %697 = vmatpush1.bf16.msra.mxu0 0
      %698 = vmatprep.subr.bf16.mxu0 0
      %699 = vmatpush1.bf16.msra.mxu0 0
      %700 = vmatprep.subr.bf16.mxu0 0
      %701 = vmatpush1.bf16.msra.mxu0 0
      %702 = vmatprep.subr.bf16.mxu0 0
      %703 = vmatpush1.bf16.msra.mxu0 0
      %704 = vmatprep.subr.bf16.mxu0 0
      %705 = vmatpush1.bf16.msra.mxu0 0
      %706 = vmatprep.subr.bf16.mxu0 0
      %707 = vmatpush1.bf16.msra.mxu0 0
      %708 = vmatprep.subr.bf16.mxu0 0
      %709 = vmatpush1.bf16.msra.mxu0 0
      %710 = vmatprep.subr.bf16.mxu0 0
      %711 = vmatpush1.bf16.msra.mxu0 0
      %712 = vmatprep.mubr.bf16.mxu0 0
      %713 = vmatmul.mubr.bf16.gmra.mrb[0].mxu0 %v675
      %v714 = vpop.f32.mrb[0].mxu0
      %v715 = vadd.f32 %v672, %v714
      %v716 = vpop.f32.mrb[0].mxu0
      %v717 = vpop.f32.mrb[0].mxu0
      %v718 = vpop.f32.mrb[0].mxu0
      %719 = vdwg.mxu0
      %v720 = vmin.f32 %v715, 20.0
      %v721 = vmul.f32 %v720, 1.442695
      %v722 = vpow.pop %v721
      %v723 = vadd.f32 %v722, 2.0
      %v724 = vmul.f32 %v722, %v723
      %v725 = vmul.f32 %v715, %v724
      %v726 = vadd.f32 %v724, 2.0
      %v727 = vrcp.pop %v726
      %v728 = vmul.f32 %v725, %v727
      %v729 = vpack.c.bf16 %v728, %v474
      %v730 = vld [vmem:[%s6] sm:$0xf]
      %731 = vset.pattern.permute.xlu0 5
      %732 = vperm.xlu0 %731, %v605
      %v733 = vpop.permute.xlu0 %732
      %vm735 = vcmask 130048
      %v737 = vsel %vm735, %v730, 0
      %739 = vmatprep.subr.bf16.mxu0 0
      %740 = vmatpush1.bf16.msra.mxu0 %v729
      %741 = vmatprep.subr.bf16.mxu0 0
      %742 = vmatpush1.bf16.msra.mxu0 0
      %743 = vmatprep.subr.bf16.mxu0 0
      %744 = vmatpush1.bf16.msra.mxu0 0
      %745 = vmatprep.subr.bf16.mxu0 0
      %746 = vmatpush1.bf16.msra.mxu0 0
      %747 = vmatprep.subr.bf16.mxu0 0
      %748 = vmatpush1.bf16.msra.mxu0 0
      %749 = vmatprep.subr.bf16.mxu0 0
      %750 = vmatpush1.bf16.msra.mxu0 0
      %751 = vmatprep.subr.bf16.mxu0 0
      %752 = vmatpush1.bf16.msra.mxu0 0
      %753 = vmatprep.subr.bf16.mxu0 0
      %754 = vmatpush1.bf16.msra.mxu0 0
      %755 = vmatprep.subr.bf16.mxu0 0
      %756 = vmatpush1.bf16.msra.mxu0 0
      %757 = vmatprep.subr.bf16.mxu0 0
      %758 = vmatpush1.bf16.msra.mxu0 0
      %759 = vmatprep.subr.bf16.mxu0 0
      %760 = vmatpush1.bf16.msra.mxu0 0
      %761 = vmatprep.subr.bf16.mxu0 0
      %762 = vmatpush1.bf16.msra.mxu0 0
      %763 = vmatprep.subr.bf16.mxu0 0
      %764 = vmatpush1.bf16.msra.mxu0 0
      %765 = vmatprep.subr.bf16.mxu0 0
      %766 = vmatpush1.bf16.msra.mxu0 0
      %767 = vmatprep.subr.bf16.mxu0 0
      %768 = vmatpush1.bf16.msra.mxu0 0
      %769 = vmatprep.subr.bf16.mxu0 0
      %770 = vmatpush1.bf16.msra.mxu0 0
      %771 = vmatprep.mubr.bf16.mxu0 0
      %772 = vmatmul.mubr.bf16.gmra.mrb[0].mxu0 %v737
      %v773 = vpop.f32.mrb[0].mxu0
      %v774 = vadd.f32 %v733, %v773
      %v775 = vpop.f32.mrb[0].mxu0
      %v776 = vpop.f32.mrb[0].mxu0
      %v777 = vpop.f32.mrb[0].mxu0
      %778 = vdwg.mxu0
      %v779 = vmin.f32 %v774, 20.0
      %v780 = vmul.f32 %v779, 1.442695
      %v781 = vpow.pop %v780
      %v782 = vadd.f32 %v781, 2.0
      %v783 = vmul.f32 %v781, %v782
      %v784 = vmul.f32 %v774, %v783
      %v785 = vadd.f32 %v783, 2.0
      %v786 = vrcp.pop %v785
      %v787 = vmul.f32 %v784, %v786
      %vm788 = vcmask 523264
      %789 = vst.msk [vmem:[%s303] sm:$0xff] %vm788, %v787
      %p790 = scmp.lt.s32.totalorder %s19, 1
      %s791 = scalar_select %p790, %s19, 1
      %s792 = smul.addr %s791, 8
      %s793 = scalar_lea.vmem %s8, %s792
      // Predicated region
      $region53: #{csp_first_stage.1} parent=51 // pred_check
        %p794 = pneg %p210
      $region54: #{csp_first_stage.1} parent=51 // pred_check_branch
        %796 = sbr.rel (%p794) target = $region56
      $region55: #{csp_first_stage.1} parent=51 // pred_region
        _
      $region56: #{csp_first_stage.1} parent=51 // pred_fallthru
        _
    $region52: #{csp_first_stage.1} parent=5 // pred_fallthru
      _
    %p797 = scmp.le.s32.totalorder 2, %s14
    // Predicated region
    $region57: #{csp_first_stage.1} parent=5 // pred_check
      %p798 = pneg %p797
    $region58: #{csp_first_stage.1} parent=5 // pred_check_branch
      %800 = sbr.rel (%p798) target = $region60
    $region59: #{csp_first_stage.1} parent=5 // pred_region
      %s801 = ssub.s32 %s14, 2
      // Predicated region
      $region61: #{csp_first_stage.1} parent=59 // pred_check
        %p802 = pneg %p216
      $region62: #{csp_first_stage.1} parent=59 // pred_check_branch
        %804 = sbr.rel (%p802) target = $region64
      $region63: #{csp_first_stage.1} parent=59 // pred_region
        %p805 = scmp.lt.s32.totalorder %s20, 1
        %s806 = scalar_select %p805, %s20, 1
        %s807 = smul.addr %s806, 8
        %s808 = scalar_lea.vmem %s8, %s807
      $region64: #{csp_first_stage.1} parent=59 // pred_fallthru
        _
    $region60: #{csp_first_stage.1} parent=5 // pred_fallthru
      _
  $region6: #{csp_first_stage.1} parent=0 // loop_footer
    %s18 = sadd.s32 1, %s14
  $region7: #{csp_first_stage.1} parent=0 // loop_footer_branch
    %13 = sbr.rel target = $region3
  $region8: #{csp_first_stage.1} parent=0 // loop_exit
    _

</llo_original>
